<compile_context>
chip_gen: v7x
topology: tpu7x:2x2x1
jax: 0.10.0
libtpu: 0.0.40
codegen_flags: <defaults>
</compile_context>

<pallas_src>
import functools

import jax
import jax.numpy as jnp
from jax import lax
from jax.experimental import pallas as pl
from jax.experimental.pallas import tpu as pltpu


def _round_up(x, m):
    return (x + m - 1) // m * m


def _fused_cls_kernel(x_ref, o_ref, *, appear_off, status_off):
    """One lane-packed block [block_b, c_pad] of raw cls logits.

    Sigmoid every channel; multiply the status channels 0:3 / 3:7 / 7:10
    (located at static offset `status_off` in the packed buffer) by the hard
    gates derived from the raw appear logits at `appear_off + {0,1,2}`.
    """
    x = x_ref[...]
    sig = jax.nn.sigmoid(x)

    # Hard gate from RAW logits: sigmoid(a) > 0.5  <=>  a > 0 (bit-identical,
    # and independent of the EUP sigmoid result).
    a = appear_off
    g0 = (x[:, a + 0:a + 1] > 0).astype(sig.dtype)   # [block_b, 1]
    g1 = (x[:, a + 1:a + 2] > 0).astype(sig.dtype)
    g2 = (x[:, a + 2:a + 3] > 0).astype(sig.dtype)

    # Per-lane multiplier: g0/g1/g2 on status channels [0,3)/[3,7)/[7,10),
    # 1.0 everywhere else (other heads, status channels >= 10, lane padding).
    ch = lax.broadcasted_iota(jnp.int32, x.shape, dimension=1)
    s0 = status_off
    mult = jnp.where((ch >= s0) & (ch < s0 + 3), g0, 1.0)
    mult = mult * jnp.where((ch >= s0 + 3) & (ch < s0 + 7), g1, 1.0)
    mult = mult * jnp.where((ch >= s0 + 7) & (ch < s0 + 10), g2, 1.0)

    o_ref[...] = (sig * mult).astype(o_ref.dtype)


def fused_cls_postprocess(heads):
    """heads: dict name -> [B, C] raw logits (must contain 'appear' and 'status').

    Returns dict name -> post-processed tensor:
      every head sigmoided; 'status' additionally gated by 'appear' as in
      AppearenceCorrectionPostProcess. One pallas_call covers all heads.
    """
    names = sorted(heads.keys())
    assert 'appear' in heads and 'status' in heads
    B = heads[names[0]].shape[0]
    for k in names:
        assert heads[k].ndim == 2 and heads[k].shape[0] == B, k
    assert heads['appear'].shape[1] >= 3
    assert heads['status'].shape[1] >= 10

    # Static channel layout of the packed buffer.
    offsets, off = {}, 0
    for k in names:
        offsets[k] = off
        off += heads[k].shape[1]
    total_c = off

    # Keep f32 compute (v5e VPU/EUP has no bf16 path; data is tiny anyway).
    compute_dtype = jnp.result_type(*[heads[k].dtype for k in names])
    packed = jnp.concatenate([heads[k].astype(compute_dtype) for k in names],
                             axis=1)

    # Lane-dense (multiple of 128) / sublane-aligned (multiple of 8) padding.
    c_pad = _round_up(total_c, 128)
    b_pad8 = _round_up(B, 8)
    block_b = min(512, b_pad8)              # parallel batch blocks for large B
    b_pad = _round_up(B, block_b)
    packed = jnp.pad(packed, ((0, b_pad - B), (0, c_pad - total_c)))

    kernel = functools.partial(_fused_cls_kernel,
                               appear_off=offsets['appear'],
                               status_off=offsets['status'])

    out = pl.pallas_call(
        kernel,
        out_shape=jax.ShapeDtypeStruct((b_pad, c_pad), compute_dtype),
        grid=(b_pad // block_b,),
        in_specs=[pl.BlockSpec((block_b, c_pad), lambda i: (i, 0))],
        out_specs=pl.BlockSpec((block_b, c_pad), lambda i: (i, 0)),
        compiler_params=pltpu.CompilerParams(
            dimension_semantics=("parallel",)),
    )(packed)

    # Slice heads back out (un-pad) outside the kernel.
    out = out[:B, :total_c]
    result = {}
    for k in names:
        c = heads[k].shape[1]
        result[k] = out[:, offsets[k]:offsets[k] + c].astype(heads[k].dtype)
    return result


def appearance_correction_postprocess(output, target):
    """JAX/Pallas equivalent of AppearenceCorrectionPostProcess.forward."""
    if 'cls' not in output:
        return output, target
    new_output = dict(output)
    new_output['cls'] = fused_cls_postprocess(dict(output['cls']))
    return new_output, target


def _reference(cls):
    out = {k: jax.nn.sigmoid(v) for k, v in cls.items()}
    gate = (out['appear'] > 0.5).astype(out['status'].dtype)
    s = out['status']
    s = s.at[:, 0:3].multiply(gate[:, 0:1])
    s = s.at[:, 3:7].multiply(gate[:, 1:2])
    s = s.at[:, 7:10].multiply(gate[:, 2:3])
    out['status'] = s
    return out


if __name__ == "__main__":
    key = jax.random.PRNGKey(0)

    # Case 1: canonical shapes (status exactly 10 channels) + extra heads.
    k1, k2, k3, k4, k5 = jax.random.split(key, 5)
    B = 8
    cls1 = {
        'appear': jax.random.normal(k1, (B, 3), dtype=jnp.float32) * 2.0,
        'status': jax.random.normal(k2, (B, 10), dtype=jnp.float32) * 2.0,
        'extra':  jax.random.normal(k3, (B, 4), dtype=jnp.float32),
        'other':  jax.random.normal(k4, (B, 37), dtype=jnp.float32),
    }
    target = jax.random.normal(k5, (B, 10), dtype=jnp.float32)

    new_output, new_target = appearance_correction_postprocess(
        {'cls': cls1}, target)
    jax.block_until_ready(new_output['cls']['status'])

    ref1 = _reference(cls1)
    for k in cls1:
        assert jnp.allclose(new_output['cls'][k], ref1[k], atol=1e-6), k

    # Case 2: unaligned batch and status with >10 channels
    # (channels 10.. must be sigmoid-only, never gated).
    k6, k7 = jax.random.split(k5)
    B2 = 5
    cls2 = {
        'appear': jax.random.normal(k6, (B2, 3), dtype=jnp.float32) * 2.0,
        'status': jax.random.normal(k7, (B2, 12), dtype=jnp.float32) * 2.0,
    }
    new_output2, _ = appearance_correction_postprocess({'cls': cls2}, None)
    jax.block_until_ready(new_output2['cls']['status'])

    ref2 = _reference(cls2)
    for k in cls2:
        assert jnp.allclose(new_output2['cls'][k], ref2[k], atol=1e-6), k

    print("KERNEL_OK")
</pallas_src>

<mosaic_0001>
module attributes {stable_mosaic.version = 11 : i64} {
  func.func @_fused_cls_kernel(%arg0: i32, %arg1: memref<8x128xf32, #tpu.memory_space<vmem>>, %arg2: memref<8x128xf32, #tpu.memory_space<vmem>>) attributes {dimension_semantics = [#tpu.dimension_semantics<parallel>], iteration_bounds = array<i64: 1>, scalar_prefetch = 0 : i64, scratch_operands = 0 : i64, tpu.core_type = #tpu.core_type<tc>, window_params = [{transform_indices = @transform_0, window_bounds = array<i64: 8, 128>}, {transform_indices = @transform_1, window_bounds = array<i64: 8, 128>}]} {
    %c0 = arith.constant 0 : index
    %c0_0 = arith.constant 0 : index
    %0 = vector.load %arg1[%c0, %c0_0] : memref<8x128xf32, #tpu.memory_space<vmem>>, vector<8x128xf32>
    %1 = arith.negf %0 : vector<8x128xf32>
    %2 = math.exp %1 : vector<8x128xf32>
    %cst = arith.constant 1.000000e+00 : f32
    %3 = vector.broadcast %cst : f32 to vector<8x128xf32>
    %4 = arith.addf %3, %2 : vector<8x128xf32>
    %5 = arith.divf %3, %4 : vector<8x128xf32>
    %6 = vector.extract_strided_slice %0 {offsets = [0, 0], sizes = [8, 1], strides = [1, 1]} : vector<8x128xf32> to vector<8x1xf32>
    %cst_1 = arith.constant 0.000000e+00 : f32
    %7 = vector.broadcast %cst_1 : f32 to vector<8x1xf32>
    %8 = arith.cmpf ogt, %6, %7 : vector<8x1xf32>
    %9 = arith.extui %8 : vector<8x1xi1> to vector<8x1xi32>
    %10 = arith.sitofp %9 : vector<8x1xi32> to vector<8x1xf32>
    %11 = vector.extract_strided_slice %0 {offsets = [0, 1], sizes = [8, 1], strides = [1, 1]} : vector<8x128xf32> to vector<8x1xf32>
    %cst_2 = arith.constant 0.000000e+00 : f32
    %12 = vector.broadcast %cst_2 : f32 to vector<8x1xf32>
    %13 = arith.cmpf ogt, %11, %12 : vector<8x1xf32>
    %14 = arith.extui %13 : vector<8x1xi1> to vector<8x1xi32>
    %15 = arith.sitofp %14 : vector<8x1xi32> to vector<8x1xf32>
    %16 = vector.extract_strided_slice %0 {offsets = [0, 2], sizes = [8, 1], strides = [1, 1]} : vector<8x128xf32> to vector<8x1xf32>
    %cst_3 = arith.constant 0.000000e+00 : f32
    %17 = vector.broadcast %cst_3 : f32 to vector<8x1xf32>
    %18 = arith.cmpf ogt, %16, %17 : vector<8x1xf32>
    %19 = arith.extui %18 : vector<8x1xi1> to vector<8x1xi32>
    %20 = arith.sitofp %19 : vector<8x1xi32> to vector<8x1xf32>
    %21 = tpu.iota {dimensions = array<i32: 1>} : vector<8x128xi32>
    %c44_i32 = arith.constant 44 : i32
    %22 = vector.broadcast %c44_i32 : i32 to vector<8x128xi32>
    %23 = arith.cmpi sge, %21, %22 : vector<8x128xi32>
    %c47_i32 = arith.constant 47 : i32
    %24 = vector.broadcast %c47_i32 : i32 to vector<8x128xi32>
    %25 = arith.cmpi slt, %21, %24 : vector<8x128xi32>
    %26 = arith.andi %23, %25 : vector<8x128xi1>
    %cst_4 = arith.constant 1.000000e+00 : f32
    %27 = vector.shape_cast %10 : vector<8x1xf32> to vector<8x1xf32>
    %28 = vector.broadcast %27 : vector<8x1xf32> to vector<8x128xf32>
    %29 = vector.broadcast %cst_4 : f32 to vector<8x128xf32>
    %30 = arith.select %26, %28, %29 : vector<8x128xi1>, vector<8x128xf32>
    %c47_i32_5 = arith.constant 47 : i32
    %31 = vector.broadcast %c47_i32_5 : i32 to vector<8x128xi32>
    %32 = arith.cmpi sge, %21, %31 : vector<8x128xi32>
    %c51_i32 = arith.constant 51 : i32
    %33 = vector.broadcast %c51_i32 : i32 to vector<8x128xi32>
    %34 = arith.cmpi slt, %21, %33 : vector<8x128xi32>
    %35 = arith.andi %32, %34 : vector<8x128xi1>
    %cst_6 = arith.constant 1.000000e+00 : f32
    %36 = vector.shape_cast %15 : vector<8x1xf32> to vector<8x1xf32>
    %37 = vector.broadcast %36 : vector<8x1xf32> to vector<8x128xf32>
    %38 = vector.broadcast %cst_6 : f32 to vector<8x128xf32>
    %39 = arith.select %35, %37, %38 : vector<8x128xi1>, vector<8x128xf32>
    %40 = arith.mulf %30, %39 : vector<8x128xf32>
    %c51_i32_7 = arith.constant 51 : i32
    %41 = vector.broadcast %c51_i32_7 : i32 to vector<8x128xi32>
    %42 = arith.cmpi sge, %21, %41 : vector<8x128xi32>
    %c54_i32 = arith.constant 54 : i32
    %43 = vector.broadcast %c54_i32 : i32 to vector<8x128xi32>
    %44 = arith.cmpi slt, %21, %43 : vector<8x128xi32>
    %45 = arith.andi %42, %44 : vector<8x128xi1>
    %cst_8 = arith.constant 1.000000e+00 : f32
    %46 = vector.shape_cast %20 : vector<8x1xf32> to vector<8x1xf32>
    %47 = vector.broadcast %46 : vector<8x1xf32> to vector<8x128xf32>
    %48 = vector.broadcast %cst_8 : f32 to vector<8x128xf32>
    %49 = arith.select %45, %47, %48 : vector<8x128xi1>, vector<8x128xf32>
    %50 = arith.mulf %40, %49 : vector<8x128xf32>
    %51 = arith.mulf %5, %50 : vector<8x128xf32>
    %c0_9 = arith.constant 0 : index
    %c0_10 = arith.constant 0 : index
    %52 = vector.load %arg2[%c0_9, %c0_10] : memref<8x128xf32, #tpu.memory_space<vmem>>, vector<8x128xf32>
    tpu.vector_store %arg2[%c0_9, %c0_10], %51 {strides = array<i32>} : memref<8x128xf32, #tpu.memory_space<vmem>>, vector<8x128xf32>,
    return
  }
  func.func @transform_0(%arg0: i32) -> (i32, i32) {
    %c0_i32 = arith.constant 0 : i32
    %c0_i32_0 = arith.constant 0 : i32
    return %arg0, %c0_i32 : i32, i32
  }
  func.func @transform_1(%arg0: i32) -> (i32, i32) {
    %c0_i32 = arith.constant 0 : i32
    %c0_i32_0 = arith.constant 0 : i32
    return %arg0, %c0_i32 : i32, i32
  }
}

</mosaic_0001>

<llo_original>
// kernel: tpu_custom_call.1
$region0: #{tpu_custom_call.1}
  #allocation0 [shape = 'u32[]', space=smem, size = 0x4, offset = 0x4, fixed_abs, tag = 'smem constant byte address 0x4 - core index']
  #allocation1 [shape = 'u32[144,128]{1,0:T(1,128)}', space=vmem, size = 0x12000, scoped, tag = 'internal scratch']
  %s0 = inlined_call_operand.hbm [shape: f32[8,128], index: 0, kind: input, shape index: {}]
  %s1 = inlined_call_operand.hbm [shape: f32[8,128], index: 1, kind: output, shape index: {}]
  %s2 = sld [smem:[#allocation0]]
  $region18: #{tpu_custom_call.1} parent=0
    _
  %s4 = ssub.s32 1, %s2
  %s5 = scalar_select 0, %s4, %s2
  $region1: #{tpu_custom_call.1} parent=0
    #allocation2 [shape = 'u8[4096]{0}', space=vmem, size = 0x1000, scoped, tag = 'input window, operand 0, single buffered']
    #allocation3 [shape = 's32[1]{0}', space=sflag, size = 0x4, scoped, tag = 'scoped memory for tpu_custom_call.1']
    #allocation4 [shape = 's32[1]{0}', space=sflag, size = 0x4, scoped, tag = 'scoped memory for tpu_custom_call.1']
    #allocation5 [shape = 'u8[4096]{0}', space=vmem, size = 0x1000, scoped, tag = 'output window, operand 0, single buffered']
    %6 = vsyncpa [#allocation3], 0
    %7 = vsyncpa [#allocation4], 0
    // Predicated region
    $region2: #{tpu_custom_call.1} parent=1 // pred_check
      _
    $region3: #{tpu_custom_call.1} parent=1 // pred_check_branch
      %9 = sbr.rel (0) target = $region5
    $region4: #{tpu_custom_call.1} parent=1 // pred_region
      %s11 = ssub.s32 128, 128
      %12 = vsyncadd [#allocation3], %s11
      %s14 = sshll.u32 [#allocation2], 4
      %s15 = int_to_ptr.vmem [resolvable:$true] %s14
      %17 = dma.hbm_to_vmem [thread:$0]  %s0, 128, %s15, [#allocation3]
    $region5: #{tpu_custom_call.1} parent=1 // pred_fallthru
      _
    // Predicated region
    $region6: #{tpu_custom_call.1} parent=1 // pred_check
      _
    $region7: #{tpu_custom_call.1} parent=1 // pred_check_branch
      %19 = sbr.rel (0) target = $region9
    $region8: #{tpu_custom_call.1} parent=1 // pred_region
      %20 = dma.done [#allocation3], 128
    $region9: #{tpu_custom_call.1} parent=1 // pred_fallthru
      _
    %v21 = vld [vmem:[#allocation2] sm:$0xff]
    %v22 = vxor.u32 %v21, 2147483648
    %v23 = vmul.f32 %v22, 1.442695
    %v24 = vpow.pop %v23
    %v25 = vadd.f32 %v24, 1.0
    %v26 = vrcp.pop %v25
    %v27 = vmul.f32 1.0, %v26
    %vm28 = vcmp.gt.f32.partialorder %v21, 0.0
    %v29 = vsel %vm28, 1, 0
    %v30 = vcvt.s32.f32 %v29
    %v31 = vlaneseq
    %v32 = vand.u32 %v31, 127
    %vm33 = vcmp.ge.s32.totalorder %v32, 44
    %vm34 = vcmp.lt.s32.totalorder %v32, 47
    %vm35 = vmand %vm33, %vm34
    %37 = vset.pattern.permute.xlu0 0
    %38 = vperm.xlu0 %37, %v30
    %v39 = vpop.permute.xlu0 %38
    %v41 = vsel %vm35, %v39, 1.0
    %vm42 = vcmp.ge.s32.totalorder %v32, 47
    %vm43 = vcmp.lt.s32.totalorder %v32, 51
    %vm44 = vmand %vm42, %vm43
    %45 = vset.pattern.permute.xlu0 1
    %46 = vperm.xlu0 %45, %v30
    %v47 = vpop.permute.xlu0 %46
    %v49 = vsel %vm44, %v47, 1.0
    %v50 = vmul.f32 %v41, %v49
    %vm51 = vcmp.ge.s32.totalorder %v32, 51
    %vm52 = vcmp.lt.s32.totalorder %v32, 54
    %vm53 = vmand %vm51, %vm52
    %54 = vset.pattern.permute.xlu0 2
    %55 = vperm.xlu0 %54, %v30
    %v56 = vpop.permute.xlu0 %55
    %v58 = vsel %vm53, %v56, 1.0
    %v59 = vmul.f32 %v50, %v58
    %v60 = vmul.f32 %v27, %v59
    %61 = vst [vmem:[#allocation5] sm:$0xff] %v60
    // Predicated region
    $region10: #{tpu_custom_call.1} parent=1 // pred_check
      _
    $region11: #{tpu_custom_call.1} parent=1 // pred_check_branch
      %63 = sbr.rel (0) target = $region13
    $region12: #{tpu_custom_call.1} parent=1 // pred_region
      %s65 = ssub.s32 128, 128
      %66 = vsyncadd [#allocation4], %s65
      %s68 = sshll.u32 [#allocation5], 4
      %s69 = int_to_ptr.vmem [resolvable:$true] %s68
      %71 = dma.vmem_to_hbm [thread:$0]  %s69, 128, %s1, [#allocation4]
    $region13: #{tpu_custom_call.1} parent=1 // pred_fallthru
      _
    // Predicated region
    $region14: #{tpu_custom_call.1} parent=1 // pred_check
      _
    $region15: #{tpu_custom_call.1} parent=1 // pred_check_branch
      %73 = sbr.rel (0) target = $region17
    $region16: #{tpu_custom_call.1} parent=1 // pred_region
      %74 = dma.done [#allocation4], 128
    $region17: #{tpu_custom_call.1} parent=1 // pred_fallthru
      _
    %75 = vsyncpa [#allocation3], 1
    %76 = vsyncpa [#allocation4], 1

</llo_original>
